<compile_context>
chip_gen: v6e
topology: v6e:2x2x1
jax: 0.10.0
libtpu: 0.0.40
codegen_flags: <defaults>
</compile_context>

<pallas_src>
import jax
import jax.numpy as jnp
from jax import lax
from jax.experimental import pallas as pl
from jax.experimental.pallas import tpu as pltpu


def _gp_cov_kernel(params_ref, xi_ref, xj_ref, cov_ref):
    """Computes one (TILE, TILE) block of the RBF covariance matrix.

    params_ref : SMEM f32[2]        [signal^2, noise^2]
    xi_ref     : VMEM (TILE, D+2)   augmented row block  [2c*x, -c*sq, -c]
    xj_ref     : VMEM (TILE, D+2)   augmented col block  [x, 1, sq]
    cov_ref    : VMEM (TILE, TILE)  output block
    """
    sig2 = params_ref[0]
    noise2 = params_ref[1]

    # Single MXU contraction over the augmented feature axis produces
    #   g[i, j] = -||x_i - x_j||^2 / (2 ell^2)   (<= 0 up to rounding)
    # No x.T copy, no separate norm broadcasts, no in-kernel VPU adds.
    g = lax.dot_general(
        xi_ref[...], xj_ref[...],
        dimension_numbers=(((1,), (1,)), ((), ())),
        preferred_element_type=jnp.float32)                   # (TILE, TILE)

    # Clamp tiny positive rounding (diagonal), one exp, one scale.
    cov_ref[...] = sig2 * jnp.exp(jnp.minimum(g, 0.0))

    # Diagonal noise only on diagonal tiles; off-diagonal tiles (the vast
    # majority) skip the iota/compare/select entirely.
    @pl.when(pl.program_id(0) == pl.program_id(1))
    def _():
        tm, tn = cov_ref.shape
        row = lax.broadcasted_iota(jnp.int32, (tm, tn), 0)
        col = lax.broadcasted_iota(jnp.int32, (tm, tn), 1)
        cov_ref[...] = jnp.where(row == col,
                                 cov_ref[...] + noise2,
                                 cov_ref[...])


def gp_covariance(x, lengthscale, signal, noise, *, tile=1024):
    """Dense RBF covariance  signal^2 * exp(-d2 / (2 ell^2)) + noise^2 * I."""
    x = jnp.asarray(x, jnp.float32)
    n, d = x.shape

    # Lane-dense tile (multiple of 128), no larger than the padded problem,
    # capped at 1024 (4 MiB f32 output block x 2 buffers fits v7x VMEM easily).
    tile = max(128, (int(tile) // 128) * 128)
    tile = min(tile, 1024)
    n_ceil128 = ((n + 127) // 128) * 128
    tile = min(tile, n_ceil128)
    n_pad = ((n + tile - 1) // tile) * tile
    nt = n_pad // tile

    if n_pad != n:
        x = jnp.pad(x, ((0, n_pad - n), (0, 0)))

    # Hoisted scalar math (wrapper-side, once).
    ell = jnp.asarray(lengthscale, jnp.float32)
    sig2 = jnp.asarray(signal, jnp.float32) ** 2
    noise2 = jnp.asarray(noise, jnp.float32) ** 2
    c = 0.5 / (ell * ell)

    # Augmented features: xi_aug . xj_aug^T == -c * ||x_i - x_j||^2.
    sq = jnp.sum(x * x, axis=-1, keepdims=True)               # (n_pad, 1)
    ones = jnp.ones((n_pad, 1), jnp.float32)
    xi_aug = jnp.concatenate([(2.0 * c) * x, -c * sq, -c * ones], axis=1)
    xj_aug = jnp.concatenate([x, ones, sq], axis=1)           # (n_pad, d+2)
    params = jnp.stack([sig2, noise2])

    cov_pad = pl.pallas_call(
        _gp_cov_kernel,
        out_shape=jax.ShapeDtypeStruct((n_pad, n_pad), jnp.float32),
        grid=(nt, nt),
        in_specs=[
            pl.BlockSpec(memory_space=pltpu.SMEM),                    # params
            # Row block index is constant across the inner (j) loop -> its DMA
            # is reused; column block streams.
            pl.BlockSpec((tile, d + 2), lambda i, j: (i, 0)),         # xi_aug
            pl.BlockSpec((tile, d + 2), lambda i, j: (j, 0)),         # xj_aug
        ],
        out_specs=pl.BlockSpec((tile, tile), lambda i, j: (i, j)),
        compiler_params=pltpu.CompilerParams(
            # Each grid point writes a distinct output tile -> safe to shard
            # across the two v7x TensorCores; no-op on single-TC v5e/v6e.
            dimension_semantics=("parallel", "parallel"),
            # ~8.5 MiB actually needed at tile=1024; keep well under v7x's
            # 64 MiB physical / 32 MiB scoped VMEM.
            vmem_limit_bytes=32 * 1024 * 1024,
        ),
    )(params, xi_aug, xj_aug)

    return cov_pad[:n, :n]


def gaussian_process_forward(x, lengthscale, signal, noise, const_mean, *,
                             tile=1024):
    """Returns (mean_vector[N], covariance_matrix[N, N]) — the parameters of the
    MultivariateNormal that GaussianProcess.forward(x, op='func') builds."""
    n = x.shape[0]
    cov = gp_covariance(x, lengthscale, signal, noise, tile=tile)
    # Constant mean has no data dependence on x: computed wrapper-side
    # (removes an output DMA stream and a masked sub-128-lane store).
    mean = jnp.full((n,), const_mean, dtype=jnp.float32)
    return mean, cov


def _reference(x, lengthscale, signal, noise, const_mean):
    x = x.astype(jnp.float32)
    sq = jnp.sum(x * x, axis=-1, keepdims=True)
    d2 = jnp.maximum(sq + sq.T - 2.0 * (x @ x.T), 0.0)
    k = (signal ** 2) * jnp.exp(-0.5 * d2 / (lengthscale ** 2))
    cov = k + (noise ** 2) * jnp.eye(x.shape[0], dtype=jnp.float32)
    mean = jnp.full((x.shape[0],), const_mean, dtype=jnp.float32)
    return mean, cov


if __name__ == "__main__":
    key = jax.random.PRNGKey(0)
    # Small but non-tile-aligned shape: exercises padding, diagonal and
    # off-diagonal tiles (tile=128 path) plus the default single-tile path.
    N, D = 200, 8
    x = jax.random.normal(key, (N, D), dtype=jnp.float32)

    # Deterministic "parameters" (the module's cov.params + mean.parameters()).
    lengthscale, signal, noise, const_mean = 1.0, 1.5, 0.1, 0.5

    ref_mean, ref_cov = _reference(x, lengthscale, signal, noise, const_mean)

    # Multi-tile path: 2x2 grid, diagonal + off-diagonal blocks.
    mean_vec, cov_mat = gaussian_process_forward(
        x, lengthscale, signal, noise, const_mean, tile=128)
    jax.block_until_ready((mean_vec, cov_mat))
    assert mean_vec.shape == (N,) and cov_mat.shape == (N, N)
    assert jnp.allclose(mean_vec, ref_mean, atol=1e-5)
    assert jnp.allclose(cov_mat, ref_cov, atol=1e-4), float(
        jnp.max(jnp.abs(cov_mat - ref_cov)))

    # Default-tile path (tile clamps to the padded problem size).
    _, cov_default = gaussian_process_forward(
        x, lengthscale, signal, noise, const_mean)
    jax.block_until_ready(cov_default)
    assert jnp.allclose(cov_default, ref_cov, atol=1e-4), float(
        jnp.max(jnp.abs(cov_default - ref_cov)))

    print("KERNEL_OK")
</pallas_src>

<mosaic_0001>
module attributes {stable_mosaic.version = 11 : i64} {
  func.func @_gp_cov_kernel(%arg0: i32, %arg1: i32, %arg2: memref<2xf32, #tpu.memory_space<smem>>, %arg3: memref<128x10xf32, #tpu.memory_space<vmem>>, %arg4: memref<128x10xf32, #tpu.memory_space<vmem>>, %arg5: memref<128x128xf32, #tpu.memory_space<vmem>>) attributes {dimension_semantics = [#tpu.dimension_semantics<parallel>, #tpu.dimension_semantics<parallel>], iteration_bounds = array<i64: 2, 2>, scalar_prefetch = 0 : i64, scratch_operands = 0 : i64, tpu.core_type = #tpu.core_type<tc>, window_params = [{transform_indices = @transform_0, window_bounds = array<i64: 2>}, {transform_indices = @transform_1, window_bounds = array<i64: 128, 10>}, {transform_indices = @transform_2, window_bounds = array<i64: 128, 10>}, {transform_indices = @transform_3, window_bounds = array<i64: 128, 128>}]} {
    %c0 = arith.constant 0 : index
    %0 = memref.load %arg2[%c0] : memref<2xf32, #tpu.memory_space<smem>>
    %c1 = arith.constant 1 : index
    %1 = memref.load %arg2[%c1] : memref<2xf32, #tpu.memory_space<smem>>
    %c0_0 = arith.constant 0 : index
    %c0_1 = arith.constant 0 : index
    %2 = vector.load %arg3[%c0_0, %c0_1] : memref<128x10xf32, #tpu.memory_space<vmem>>, vector<128x10xf32>
    %c0_2 = arith.constant 0 : index
    %c0_3 = arith.constant 0 : index
    %3 = vector.load %arg4[%c0_2, %c0_3] : memref<128x10xf32, #tpu.memory_space<vmem>>, vector<128x10xf32>
    %cst = arith.constant dense<0.000000e+00> : vector<128x128xf32>
    %4 = tpu.matmul %2, %3, %cst {dimension_numbers = #tpu.dot_dimension_numbers<[1], [1], [0], [0], [0, 0, 1, 0], [], []>} : vector<128x10xf32>, vector<128x10xf32>, vector<128x128xf32> -> vector<128x128xf32>
    %cst_4 = arith.constant 0.000000e+00 : f32
    %5 = vector.broadcast %cst_4 : f32 to vector<128x128xf32>
    %6 = arith.minimumf %4, %5 : vector<128x128xf32>
    %7 = math.exp %6 : vector<128x128xf32>
    %8 = vector.broadcast %0 : f32 to vector<128x128xf32>
    %9 = arith.mulf %8, %7 : vector<128x128xf32>
    %c0_5 = arith.constant 0 : index
    %c0_6 = arith.constant 0 : index
    %10 = vector.load %arg5[%c0_5, %c0_6] : memref<128x128xf32, #tpu.memory_space<vmem>>, vector<128x128xf32>
    tpu.vector_store %arg5[%c0_5, %c0_6], %9 {strides = array<i32>} : memref<128x128xf32, #tpu.memory_space<vmem>>, vector<128x128xf32>,
    %11 = arith.cmpi eq, %arg0, %arg1 : i32
    %12 = arith.extui %11 : i1 to i32
    %c0_i32 = arith.constant 0 : i32
    %13 = arith.cmpi ne, %12, %c0_i32 : i32
    scf.if %13 {
      %14 = tpu.iota {dimensions = array<i32: 0>} : vector<128x128xi32>
      %15 = tpu.iota {dimensions = array<i32: 1>} : vector<128x128xi32>
      %16 = arith.cmpi eq, %14, %15 : vector<128x128xi32>
      %c0_7 = arith.constant 0 : index
      %c0_8 = arith.constant 0 : index
      %17 = vector.load %arg5[%c0_7, %c0_8] : memref<128x128xf32, #tpu.memory_space<vmem>>, vector<128x128xf32>
      %18 = vector.broadcast %1 : f32 to vector<128x128xf32>
      %19 = arith.addf %17, %18 : vector<128x128xf32>
      %c0_9 = arith.constant 0 : index
      %c0_10 = arith.constant 0 : index
      %20 = vector.load %arg5[%c0_9, %c0_10] : memref<128x128xf32, #tpu.memory_space<vmem>>, vector<128x128xf32>
      %21 = arith.select %16, %19, %20 : vector<128x128xi1>, vector<128x128xf32>
      %c0_11 = arith.constant 0 : index
      %c0_12 = arith.constant 0 : index
      %22 = vector.load %arg5[%c0_11, %c0_12] : memref<128x128xf32, #tpu.memory_space<vmem>>, vector<128x128xf32>
      tpu.vector_store %arg5[%c0_11, %c0_12], %21 {strides = array<i32>} : memref<128x128xf32, #tpu.memory_space<vmem>>, vector<128x128xf32>,
    } else {
    }
    return
  }
  func.func @transform_0(%arg0: i32, %arg1: i32) -> i32 {
    %c0_i32 = arith.constant 0 : i32
    %c0_i32_0 = arith.constant 0 : i32
    return %c0_i32 : i32
  }
  func.func @transform_1(%arg0: i32, %arg1: i32) -> (i32, i32) {
    %c0_i32 = arith.constant 0 : i32
    %c0_i32_0 = arith.constant 0 : i32
    return %arg0, %c0_i32 : i32, i32
  }
  func.func @transform_2(%arg0: i32, %arg1: i32) -> (i32, i32) {
    %c0_i32 = arith.constant 0 : i32
    %c0_i32_0 = arith.constant 0 : i32
    return %arg1, %c0_i32 : i32, i32
  }
  func.func @transform_3(%arg0: i32, %arg1: i32) -> (i32, i32) {
    %c0_i32 = arith.constant 0 : i32
    return %arg0, %arg1 : i32, i32
  }
}

</mosaic_0001>

<llo_original>
// kernel: tpu_custom_call.1
$region0: #{tpu_custom_call.1}
  #allocation0 [shape = 'u32[]', space=smem, size = 0x4, offset = 0x4, fixed_abs, tag = 'smem constant byte address 0x4 - core index']
  #allocation1 [shape = 'u32[144,128]{1,0:T(1,128)}', space=vmem, size = 0x12000, scoped, tag = 'internal scratch']
  %s0 = inlined_call_operand.vmem [shape: f32[2], index: 0, kind: input, shape index: {}]
  %s1 = inlined_call_operand.vmem [shape: f32[256,10], index: 1, kind: input, shape index: {}]
  %s2 = inlined_call_operand.vmem [shape: f32[256,10], index: 2, kind: input, shape index: {}]
  %s3 = inlined_call_operand.hbm [shape: f32[256,256], index: 3, kind: output, shape index: {}]
  %s4 = sld [smem:[#allocation0]]
  $region53: #{tpu_custom_call.1} parent=0
    _
  %s6 = ssub.s32 1, %s4
  %s7 = scalar_select 0, %s6, %s4
  $region1: #{tpu_custom_call.1} parent=0
    #allocation2 [shape = 'u8[512]{0}', space=smem, size = 0x200, scoped, tag = 'input window, operand 0, single buffered']
    #allocation3 [shape = 's32[2]{0}', space=sflag, size = 0x8, scoped, tag = 'scoped memory for tpu_custom_call.1']
    #allocation4 [shape = 's32[2]{0}', space=sflag, size = 0x8, scoped, tag = 'scoped memory for tpu_custom_call.1']
    #allocation5 [shape = 'u8[131072]{0}', space=vmem, size = 0x20000, scoped, tag = 'output window, operand 0']
    %8 = vsyncpa [#allocation4], 0
    %9 = vsyncpa [#allocation3], 0
    %s10 = scalar_lea.sflag [#allocation3], 1
    %11 = vsyncpa %s10, 0
    loop: start=0, step=1, limit=6
    $region2: #{tpu_custom_call.1} parent=1 // loop_pre_header
      _
    $region3: #{tpu_custom_call.1} parent=1 // loop_header
      %s13 = sphi 0, %s17
      %p14 = scmp.ge.s32.totalorder %s13, 6
      %s20 = sphi 0, %s32
      %s21 = sphi 0, %s28
      %s22 = sphi 0, %s20
      %s23 = sphi 0, %s21
      %s24 = sphi 0, %s22
      %s25 = sphi 0, %s23
      %s33 = sphi 0, %s33
      %s35 = sphi 0, %s33
      %s36 = sphi 0, %s35
      %s50 = sphi 0, %s36
      %s56 = sphi 0, %s58
      %s59 = sphi 0, %s56
      %s60 = sphi 0, %s59
      %s76 = sphi 0, %s60
      %s82 = sphi 0, %s84
      %s85 = sphi 0, %s82
      %s86 = sphi 0, %s85
      %s102 = sphi 0, %s86
      %s110 = sphi 0, %s112
      %s113 = sphi 0, %s110
      %s114 = sphi 0, %s113
      %s130 = sphi 0, %s114
    $region4: #{tpu_custom_call.1} parent=1 // loop_header_branch
      %16 = sbr.rel (%p14) target = $region8
    $region5: #{tpu_custom_call.1} parent=1 // loop_body
      %s18 = ssub.s32 %s13, 1
      %s19 = ssub.s32 %s13, 2
      %s26 = sadd.s32 1, %s21
      %p27 = scmp.ge.s32.totalorder %s26, 2
      %s28 = scalar_select %p27, 0, %s26
      %s29 = sadd.s32 1, %s20
      %s30 = scalar_select %p27, %s29, %s20
      %p31 = scmp.ge.s32.totalorder %s30, 2
      %s32 = scalar_select %p31, 0, %s30
      %s34 = sadd.s32 %s33, 1
      %p37 = scmp.eq.s32.totalorder %s13, 3
      %p38 = scmp.ne.s32.totalorder %s33, %s35
      %p39 = scmp.eq.s32.totalorder %s13, 0
      %p40 = por %p38, %p39
      %p41 = scmp.ne.s32.totalorder %s33, %s35
      %p42 = scmp.eq.s32.totalorder %s18, 3
      %p43 = por %p41, %p42
      %p44 = scmp.ne.s32.totalorder %s35, %s36
      %p45 = scmp.eq.s32.totalorder %s18, 0
      %p46 = por %p44, %p45
      %p47 = scmp.ne.s32.totalorder %s35, %s36
      %p48 = scmp.eq.s32.totalorder %s19, 3
      %p49 = por %p47, %p48
      %p51 = scmp.ne.s32.totalorder %s36, %s50
      %p52 = scmp.eq.s32.totalorder %s19, 0
      %p53 = por %p51, %p52
      %s54 = ssub.s32 %s20, %s32
      %p55 = scmp.eq.s32.totalorder %s54, 0
      %s57 = sadd.s32 %s56, 1
      %s58 = scalar_select %p55, %s56, %s57
      %p61 = pneg %p55
      %p62 = scmp.eq.s32.totalorder %s13, 3
      %p63 = por %p61, %p62
      %p64 = scmp.ne.s32.totalorder %s56, %s59
      %p65 = scmp.eq.s32.totalorder %s13, 0
      %p66 = por %p64, %p65
      %p67 = scmp.ne.s32.totalorder %s56, %s59
      %p68 = scmp.eq.s32.totalorder %s18, 3
      %p69 = por %p67, %p68
      %p70 = scmp.ne.s32.totalorder %s59, %s60
      %p71 = scmp.eq.s32.totalorder %s18, 0
      %p72 = por %p70, %p71
      %p73 = scmp.ne.s32.totalorder %s59, %s60
      %p74 = scmp.eq.s32.totalorder %s19, 3
      %p75 = por %p73, %p74
      %p77 = scmp.ne.s32.totalorder %s60, %s76
      %p78 = scmp.eq.s32.totalorder %s19, 0
      %p79 = por %p77, %p78
      %s80 = ssub.s32 %s21, %s28
      %p81 = scmp.eq.s32.totalorder %s80, 0
      %s83 = sadd.s32 %s82, 1
      %s84 = scalar_select %p81, %s82, %s83
      %p87 = pneg %p81
      %p88 = scmp.eq.s32.totalorder %s13, 3
      %p89 = por %p87, %p88
      %p90 = scmp.ne.s32.totalorder %s82, %s85
      %p91 = scmp.eq.s32.totalorder %s13, 0
      %p92 = por %p90, %p91
      %p93 = scmp.ne.s32.totalorder %s82, %s85
      %p94 = scmp.eq.s32.totalorder %s18, 3
      %p95 = por %p93, %p94
      %p96 = scmp.ne.s32.totalorder %s85, %s86
      %p97 = scmp.eq.s32.totalorder %s18, 0
      %p98 = por %p96, %p97
      %p99 = scmp.ne.s32.totalorder %s85, %s86
      %p100 = scmp.eq.s32.totalorder %s19, 3
      %p101 = por %p99, %p100
      %p103 = scmp.ne.s32.totalorder %s86, %s102
      %p104 = scmp.eq.s32.totalorder %s19, 0
      %p105 = por %p103, %p104
      %s106 = ssub.s32 %s20, %s32
      %s107 = ssub.s32 %s21, %s28
      %s108 = sor.u32 %s106, %s107
      %p109 = scmp.eq.s32.totalorder %s108, 0
      %s111 = sadd.s32 %s110, 1
      %s112 = scalar_select %p109, %s110, %s111
      %p115 = pneg %p109
      %p116 = scmp.eq.s32.totalorder %s13, 3
      %p117 = por %p115, %p116
      %p118 = scmp.ne.s32.totalorder %s110, %s113
      %p119 = scmp.eq.s32.totalorder %s13, 0
      %p120 = por %p118, %p119
      %p121 = scmp.ne.s32.totalorder %s110, %s113
      %p122 = scmp.eq.s32.totalorder %s18, 3
      %p123 = por %p121, %p122
      %p124 = scmp.ne.s32.totalorder %s113, %s114
      %p125 = scmp.eq.s32.totalorder %s18, 0
      %p126 = por %p124, %p125
      %p127 = scmp.ne.s32.totalorder %s113, %s114
      %p128 = scmp.eq.s32.totalorder %s19, 3
      %p129 = por %p127, %p128
      %p131 = scmp.ne.s32.totalorder %s114, %s130
      %p132 = scmp.eq.s32.totalorder %s19, 0
      %p133 = por %p131, %p132
      %p134 = scmp.le.s32.totalorder 1, %s13
      %p135 = scmp.lt.s32.totalorder %s13, 5
      %p136 = pnand %p134, %p135
      %p137 = pneg %p136
      // Predicated region
      $region9: #{tpu_custom_call.1} parent=5 // pred_check
        _
      $region10: #{tpu_custom_call.1} parent=5 // pred_check_branch
        %139 = sbr.rel (%p136) target = $region12
      $region11: #{tpu_custom_call.1} parent=5 // pred_region
        %s140 = ssub.s32 %s13, 1
        // Predicated region
        $region13: #{tpu_custom_call.1} parent=11 // pred_check
          %p141 = pneg %p46
        $region14: #{tpu_custom_call.1} parent=11 // pred_check_branch
          %143 = sbr.rel (%p141) target = $region16
        $region15: #{tpu_custom_call.1} parent=11 // pred_region
          %s145 = ssub.s32 16, 16
          %146 = vsyncadd [#allocation4], %s145
          %s148 = sshll.u32 %s0, 4
          %s149 = int_to_ptr.vmem [resolvable:$true] %s148
          %151 = dma.vmem_to_smem %s149, 16, [#allocation2], [#allocation4]
        $region16: #{tpu_custom_call.1} parent=11 // pred_fallthru
          _
      $region12: #{tpu_custom_call.1} parent=5 // pred_fallthru
        _
      %p152 = scmp.lt.s32.totalorder %s13, 4
      // Predicated region
      $region17: #{tpu_custom_call.1} parent=5 // pred_check
        %p153 = pneg %p152
      $region18: #{tpu_custom_call.1} parent=5 // pred_check_branch
        %155 = sbr.rel (%p153) target = $region20
      $region19: #{tpu_custom_call.1} parent=5 // pred_region
        // Predicated region
        $region21: #{tpu_custom_call.1} parent=19 // pred_check
          %p156 = pneg %p66
        $region22: #{tpu_custom_call.1} parent=19 // pred_check_branch
          %158 = sbr.rel (%p156) target = $region24
        $region23: #{tpu_custom_call.1} parent=19 // pred_region
          %s159 = smul.u32 16, %s20
          %p160 = scmp.lt.s32.totalorder %s159, 31
          %s161 = scalar_select %p160, %s159, 31
          %s162 = smul.addr %s161, 8
          %s163 = scalar_lea.vmem %s1, %s162
          %s164 = smul.u32 16, %s20
        $region24: #{tpu_custom_call.1} parent=19 // pred_fallthru
          _
        // Predicated region
        $region25: #{tpu_custom_call.1} parent=19 // pred_check
          %p165 = pneg %p92
        $region26: #{tpu_custom_call.1} parent=19 // pred_check_branch
          %167 = sbr.rel (%p165) target = $region28
        $region27: #{tpu_custom_call.1} parent=19 // pred_region
          %s168 = smul.u32 16, %s21
          %p169 = scmp.lt.s32.totalorder %s168, 31
          %s170 = scalar_select %p169, %s168, 31
          %s171 = smul.addr %s170, 8
          %s172 = scalar_lea.vmem %s2, %s171
          %s173 = smul.u32 16, %s21
        $region28: #{tpu_custom_call.1} parent=19 // pred_fallthru
          _
      $region20: #{tpu_custom_call.1} parent=5 // pred_fallthru
        _
      %p174 = scmp.le.s32.totalorder 1, %s13
      %p175 = scmp.lt.s32.totalorder %s13, 5
      %p176 = pnand %p174, %p175
      %p177 = pneg %p176
      // Predicated region
      $region29: #{tpu_custom_call.1} parent=5 // pred_check
        _
      $region30: #{tpu_custom_call.1} parent=5 // pred_check_branch
        %179 = sbr.rel (%p176) target = $region32
      $region31: #{tpu_custom_call.1} parent=5 // pred_region
        %s180 = ssub.s32 %s13, 1
        // Predicated region
        $region33: #{tpu_custom_call.1} parent=31 // pred_check
          %p181 = pneg %p46
        $region34: #{tpu_custom_call.1} parent=31 // pred_check_branch
          %183 = sbr.rel (%p181) target = $region36
        $region35: #{tpu_custom_call.1} parent=31 // pred_region
          %184 = dma.done [#allocation4], 16
        $region36: #{tpu_custom_call.1} parent=31 // pred_fallthru
          _
        %185 = sfence
        %p186 = pneg %p46
        %p187 = pneg %p43
        %s188 = smul.u32 16, %s22
        %p189 = scmp.lt.s32.totalorder %s188, 31
        %s190 = scalar_select %p189, %s188, 31
        %s191 = smul.addr %s190, 8
        %s192 = scalar_lea.vmem %s1, %s191
        %p193 = pneg %p72
        %p194 = pneg %p69
        %s195 = smul.u32 16, %s23
        %p196 = scmp.lt.s32.totalorder %s195, 31
        %s197 = scalar_select %p196, %s195, 31
        %s198 = smul.addr %s197, 8
        %s199 = scalar_lea.vmem %s2, %s198
        %p200 = pneg %p98
        %p201 = pneg %p95
        %p202 = pneg %p126
        %p203 = pneg %p123
        %s204 = sand.u32 %s113, 1
        %s205 = scalar_lea.sflag [#allocation3], %s204
        %s206 = sand.u32 %s113, 1
        %s207 = smul.addr %s206, 128
        %s208 = scalar_lea.vmem [#allocation5], %s207
        %s209 = smul.u32 16, %s22
        %p210 = scmp.lt.s32.totalorder %s209, 31
        %s211 = scalar_select %p210, %s209, 31
        %s212 = smul.addr %s211, 8
        %s213 = scalar_lea.vmem %s1, %s212
        %s214 = smul.u32 16, %s22
        %s215 = smul.u32 16, %s23
        %p216 = scmp.lt.s32.totalorder %s215, 31
        %s217 = scalar_select %p216, %s215, 31
        %s218 = smul.addr %s217, 8
        %s219 = scalar_lea.vmem %s2, %s218
        %s220 = smul.u32 16, %s23
        %s221 = smul.u32 16, %s22
        %s222 = sld [smem:[#allocation2]]
        %s223 = sld [smem:[#allocation2 + $0x1]]
        %v224 = vld [vmem:[%s213] sm:$0xff]
        %v225 = vld [vmem:[%s213 + $0x8] sm:$0xff]
        %v226 = vld [vmem:[%s213 + $0x10] sm:$0xff]
        %v227 = vld [vmem:[%s213 + $0x18] sm:$0xff]
        %v228 = vld [vmem:[%s213 + $0x20] sm:$0xff]
        %v229 = vld [vmem:[%s213 + $0x28] sm:$0xff]
        %v230 = vld [vmem:[%s213 + $0x30] sm:$0xff]
        %v231 = vld [vmem:[%s213 + $0x38] sm:$0xff]
        %v232 = vld [vmem:[%s213 + $0x40] sm:$0xff]
        %v233 = vld [vmem:[%s213 + $0x48] sm:$0xff]
        %v234 = vld [vmem:[%s213 + $0x50] sm:$0xff]
        %v235 = vld [vmem:[%s213 + $0x58] sm:$0xff]
        %v236 = vld [vmem:[%s213 + $0x60] sm:$0xff]
        %v237 = vld [vmem:[%s213 + $0x68] sm:$0xff]
        %v238 = vld [vmem:[%s213 + $0x70] sm:$0xff]
        %v239 = vld [vmem:[%s213 + $0x78] sm:$0xff]
        %v240 = vld [vmem:[%s219] sm:$0xff]
        %v241 = vld [vmem:[%s219 + $0x8] sm:$0xff]
        %v242 = vld [vmem:[%s219 + $0x10] sm:$0xff]
        %v243 = vld [vmem:[%s219 + $0x18] sm:$0xff]
        %v244 = vld [vmem:[%s219 + $0x20] sm:$0xff]
        %v245 = vld [vmem:[%s219 + $0x28] sm:$0xff]
        %v246 = vld [vmem:[%s219 + $0x30] sm:$0xff]
        %v247 = vld [vmem:[%s219 + $0x38] sm:$0xff]
        %v248 = vld [vmem:[%s219 + $0x40] sm:$0xff]
        %v249 = vld [vmem:[%s219 + $0x48] sm:$0xff]
        %v250 = vld [vmem:[%s219 + $0x50] sm:$0xff]
        %v251 = vld [vmem:[%s219 + $0x58] sm:$0xff]
        %v252 = vld [vmem:[%s219 + $0x60] sm:$0xff]
        %v253 = vld [vmem:[%s219 + $0x68] sm:$0xff]
        %v254 = vld [vmem:[%s219 + $0x70] sm:$0xff]
        %v255 = vld [vmem:[%s219 + $0x78] sm:$0xff]
        %vm256 = vcmask 80896
        %v258 = vsel %vm256, %v224, 0
        %v261 = vsel %vm256, %v225, 0
        %v264 = vsel %vm256, %v226, 0
        %v267 = vsel %vm256, %v227, 0
        %v270 = vsel %vm256, %v228, 0
        %v273 = vsel %vm256, %v229, 0
        %v276 = vsel %vm256, %v230, 0
        %v279 = vsel %vm256, %v231, 0
        %v282 = vsel %vm256, %v232, 0
        %v285 = vsel %vm256, %v233, 0
        %v288 = vsel %vm256, %v234, 0
        %v291 = vsel %vm256, %v235, 0
        %v294 = vsel %vm256, %v236, 0
        %v297 = vsel %vm256, %v237, 0
        %v300 = vsel %vm256, %v238, 0
        %v303 = vsel %vm256, %v239, 0
        %v306 = vsel %vm256, %v240, 0
        %v309 = vsel %vm256, %v241, 0
        %v312 = vsel %vm256, %v242, 0
        %v315 = vsel %vm256, %v243, 0
        %v318 = vsel %vm256, %v244, 0
        %v321 = vsel %vm256, %v245, 0
        %v324 = vsel %vm256, %v246, 0
        %v327 = vsel %vm256, %v247, 0
        %v330 = vsel %vm256, %v248, 0
        %v333 = vsel %vm256, %v249, 0
        %v336 = vsel %vm256, %v250, 0
        %v339 = vsel %vm256, %v251, 0
        %v342 = vsel %vm256, %v252, 0
        %v345 = vsel %vm256, %v253, 0
        %v348 = vsel %vm256, %v254, 0
        %v351 = vsel %vm256, %v255, 0
        %353 = vmatprep.subr.mxu0 0.0
        %354 = vmatpush1.xpose.msra.mxu0 %v351
        %355 = vmatprep.subr.mxu0 0.0
        %356 = vmatpush1.xpose.msra.mxu0 %v348
        %357 = vmatprep.subr.mxu0 0.0
        %358 = vmatpush1.xpose.msra.mxu0 %v345
        %359 = vmatprep.subr.mxu0 0.0
        %360 = vmatpush1.xpose.msra.mxu0 %v342
        %361 = vmatprep.subr.mxu0 0.0
        %362 = vmatpush1.xpose.msra.mxu0 %v339
        %363 = vmatprep.subr.mxu0 0.0
        %364 = vmatpush1.xpose.msra.mxu0 %v336
        %365 = vmatprep.subr.mxu0 0.0
        %366 = vmatpush1.xpose.msra.mxu0 %v333
        %367 = vmatprep.subr.mxu0 0.0
        %368 = vmatpush1.xpose.msra.mxu0 %v330
        %369 = vmatprep.subr.mxu0 0.0
        %370 = vmatpush1.xpose.msra.mxu0 %v327
        %371 = vmatprep.subr.mxu0 0.0
        %372 = vmatpush1.xpose.msra.mxu0 %v324
        %373 = vmatprep.subr.mxu0 0.0
        %374 = vmatpush1.xpose.msra.mxu0 %v321
        %375 = vmatprep.subr.mxu0 0.0
        %376 = vmatpush1.xpose.msra.mxu0 %v318
        %377 = vmatprep.subr.mxu0 0.0
        %378 = vmatpush1.xpose.msra.mxu0 %v315
        %379 = vmatprep.subr.mxu0 0.0
        %380 = vmatpush1.xpose.msra.mxu0 %v312
        %381 = vmatprep.subr.mxu0 0.0
        %382 = vmatpush1.xpose.msra.mxu0 %v309
        %383 = vmatprep.subr.mxu0 0.0
        %384 = vmatpush1.xpose.msra.mxu0 %v306
        %385 = vmatprep.subr.mxu0 0.0
        %386 = vmatpush2.xpose.msra.mxu0 0.0
        %387 = vmatprep.subr.mxu0 0.0
        %388 = vmatpush2.xpose.msra.mxu0 0.0
        %389 = vmatprep.subr.mxu0 0.0
        %390 = vmatpush2.xpose.msra.mxu0 0.0
        %391 = vmatprep.subr.mxu0 0.0
        %392 = vmatpush2.xpose.msra.mxu0 0.0
        %393 = vmatprep.subr.mxu0 0.0
        %394 = vmatpush2.xpose.msra.mxu0 0.0
        %395 = vmatprep.subr.mxu0 0.0
        %396 = vmatpush2.xpose.msra.mxu0 0.0
        %397 = vmatprep.subr.mxu0 0.0
        %398 = vmatpush2.xpose.msra.mxu0 0.0
        %399 = vmatprep.subr.mxu0 0.0
        %400 = vmatpush2.xpose.msra.mxu0 0.0
        %401 = vmatprep.subr.mxu0 0.0
        %402 = vmatpush2.xpose.msra.mxu0 0.0
        %403 = vmatprep.subr.mxu0 0.0
        %404 = vmatpush2.xpose.msra.mxu0 0.0
        %405 = vmatprep.subr.mxu0 0.0
        %406 = vmatpush2.xpose.msra.mxu0 0.0
        %407 = vmatprep.subr.mxu0 0.0
        %408 = vmatpush2.xpose.msra.mxu0 0.0
        %409 = vmatprep.subr.mxu0 0.0
        %410 = vmatpush2.xpose.msra.mxu0 0.0
        %411 = vmatprep.subr.mxu0 0.0
        %412 = vmatpush2.xpose.msra.mxu0 0.0
        %413 = vmatprep.subr.mxu0 0.0
        %414 = vmatpush2.xpose.msra.mxu0 0.0
        %415 = vmatprep.subr.mxu0 0.0
        %416 = vmatpush2.xpose.msra.mxu0 0.0
        %417 = vmatprep.mubr.f32.mxu0 0.0
        %418 = vmatmul.mubr.f32.gmra.mxu0 %v258
        %v419 = vpop.f32.mrf.mxu0
        %v420 = vadd.f32 0.0, %v419
        %v421 = vpop.f32.mrf.mxu0
        %422 = vmatprep.mubr.f32.mxu0 0.0
        %423 = vmatmul.mubr.f32.gmra.mxu0 %v261
        %v424 = vpop.f32.mrf.mxu0
        %v425 = vadd.f32 0.0, %v424
        %v426 = vpop.f32.mrf.mxu0
        %427 = vmatprep.mubr.f32.mxu0 0.0
        %428 = vmatmul.mubr.f32.gmra.mxu0 %v264
        %v429 = vpop.f32.mrf.mxu0
        %v430 = vadd.f32 0.0, %v429
        %v431 = vpop.f32.mrf.mxu0
        %432 = vmatprep.mubr.f32.mxu0 0.0
        %433 = vmatmul.mubr.f32.gmra.mxu0 %v267
        %v434 = vpop.f32.mrf.mxu0
        %v435 = vadd.f32 0.0, %v434
        %v436 = vpop.f32.mrf.mxu0
        %437 = vmatprep.mubr.f32.mxu0 0.0
        %438 = vmatmul.mubr.f32.gmra.mxu0 %v270
        %v439 = vpop.f32.mrf.mxu0
        %v440 = vadd.f32 0.0, %v439
        %v441 = vpop.f32.mrf.mxu0
        %442 = vmatprep.mubr.f32.mxu0 0.0
        %443 = vmatmul.mubr.f32.gmra.mxu0 %v273
        %v444 = vpop.f32.mrf.mxu0
        %v445 = vadd.f32 0.0, %v444
        %v446 = vpop.f32.mrf.mxu0
        %447 = vmatprep.mubr.f32.mxu0 0.0
        %448 = vmatmul.mubr.f32.gmra.mxu0 %v276
        %v449 = vpop.f32.mrf.mxu0
        %v450 = vadd.f32 0.0, %v449
        %v451 = vpop.f32.mrf.mxu0
        %452 = vmatprep.mubr.f32.mxu0 0.0
        %453 = vmatmul.mubr.f32.gmra.mxu0 %v279
        %v454 = vpop.f32.mrf.mxu0
        %v455 = vadd.f32 0.0, %v454
        %v456 = vpop.f32.mrf.mxu0
        %457 = vmatprep.mubr.f32.mxu0 0.0
        %458 = vmatmul.mubr.f32.gmra.mxu0 %v282
        %v459 = vpop.f32.mrf.mxu0
        %v460 = vadd.f32 0.0, %v459
        %v461 = vpop.f32.mrf.mxu0
        %462 = vmatprep.mubr.f32.mxu0 0.0
        %463 = vmatmul.mubr.f32.gmra.mxu0 %v285
        %v464 = vpop.f32.mrf.mxu0
        %v465 = vadd.f32 0.0, %v464
        %v466 = vpop.f32.mrf.mxu0
        %467 = vmatprep.mubr.f32.mxu0 0.0
        %468 = vmatmul.mubr.f32.gmra.mxu0 %v288
        %v469 = vpop.f32.mrf.mxu0
        %v470 = vadd.f32 0.0, %v469
        %v471 = vpop.f32.mrf.mxu0
        %472 = vmatprep.mubr.f32.mxu0 0.0
        %473 = vmatmul.mubr.f32.gmra.mxu0 %v291
        %v474 = vpop.f32.mrf.mxu0
        %v475 = vadd.f32 0.0, %v474
        %v476 = vpop.f32.mrf.mxu0
        %477 = vmatprep.mubr.f32.mxu0 0.0
        %478 = vmatmul.mubr.f32.gmra.mxu0 %v294
        %v479 = vpop.f32.mrf.mxu0
        %v480 = vadd.f32 0.0, %v479
        %v481 = vpop.f32.mrf.mxu0
        %482 = vmatprep.mubr.f32.mxu0 0.0
        %483 = vmatmul.mubr.f32.gmra.mxu0 %v297
        %v484 = vpop.f32.mrf.mxu0
        %v485 = vadd.f32 0.0, %v484
        %v486 = vpop.f32.mrf.mxu0
        %487 = vmatprep.mubr.f32.mxu0 0.0
        %488 = vmatmul.mubr.f32.gmra.mxu0 %v300
        %v489 = vpop.f32.mrf.mxu0
        %v490 = vadd.f32 0.0, %v489
        %v491 = vpop.f32.mrf.mxu0
        %492 = vmatprep.mubr.f32.mxu0 0.0
        %493 = vmatmul.mubr.f32.gmra.mxu0 %v303
        %v494 = vpop.f32.mrf.mxu0
        %v495 = vadd.f32 0.0, %v494
        %v496 = vpop.f32.mrf.mxu0
        %497 = vdwg.mxu0
        %v498 = vmin.f32 %v420, 0.0
        %v499 = vmin.f32 %v425, 0.0
        %v500 = vmin.f32 %v430, 0.0
        %v501 = vmin.f32 %v435, 0.0
        %v502 = vmin.f32 %v440, 0.0
        %v503 = vmin.f32 %v445, 0.0
        %v504 = vmin.f32 %v450, 0.0
        %v505 = vmin.f32 %v455, 0.0
        %v506 = vmin.f32 %v460, 0.0
        %v507 = vmin.f32 %v465, 0.0
        %v508 = vmin.f32 %v470, 0.0
        %v509 = vmin.f32 %v475, 0.0
        %v510 = vmin.f32 %v480, 0.0
        %v511 = vmin.f32 %v485, 0.0
        %v512 = vmin.f32 %v490, 0.0
        %v513 = vmin.f32 %v495, 0.0
        %v514 = vmul.f32 %v498, 1.442695
        %v515 = vpow.pop %v514
        %v516 = vmul.f32 %v499, 1.442695
        %v517 = vpow.pop %v516
        %v518 = vmul.f32 %v500, 1.442695
        %v519 = vpow.pop %v518
        %v520 = vmul.f32 %v501, 1.442695
        %v521 = vpow.pop %v520
        %v522 = vmul.f32 %v502, 1.442695
        %v523 = vpow.pop %v522
        %v524 = vmul.f32 %v503, 1.442695
        %v525 = vpow.pop %v524
        %v526 = vmul.f32 %v504, 1.442695
        %v527 = vpow.pop %v526
        %v528 = vmul.f32 %v505, 1.442695
        %v529 = vpow.pop %v528
        %v530 = vmul.f32 %v506, 1.442695
        %v531 = vpow.pop %v530
        %v532 = vmul.f32 %v507, 1.442695
        %v533 = vpow.pop %v532
        %v534 = vmul.f32 %v508, 1.442695
        %v535 = vpow.pop %v534
        %v536 = vmul.f32 %v509, 1.442695
        %v537 = vpow.pop %v536
        %v538 = vmul.f32 %v510, 1.442695
        %v539 = vpow.pop %v538
        %v540 = vmul.f32 %v511, 1.442695
        %v541 = vpow.pop %v540
        %v542 = vmul.f32 %v512, 1.442695
        %v543 = vpow.pop %v542
        %v544 = vmul.f32 %v513, 1.442695
        %v545 = vpow.pop %v544
        %v546 = vstv %s222
        %v547 = vmul.f32 %v546, %v515
        %v548 = vmul.f32 %v546, %v517
        %v549 = vmul.f32 %v546, %v519
        %v550 = vmul.f32 %v546, %v521
        %v551 = vmul.f32 %v546, %v523
        %v552 = vmul.f32 %v546, %v525
        %v553 = vmul.f32 %v546, %v527
        %v554 = vmul.f32 %v546, %v529
        %v555 = vmul.f32 %v546, %v531
        %v556 = vmul.f32 %v546, %v533
        %v557 = vmul.f32 %v546, %v535
        %v558 = vmul.f32 %v546, %v537
        %v559 = vmul.f32 %v546, %v539
        %v560 = vmul.f32 %v546, %v541
        %v561 = vmul.f32 %v546, %v543
        %v562 = vmul.f32 %v546, %v545
        %563 = vst [vmem:[%s208] sm:$0xff] %v547
        %564 = vst [vmem:[%s208 + $0x8] sm:$0xff] %v548
        %565 = vst [vmem:[%s208 + $0x10] sm:$0xff] %v549
        %566 = vst [vmem:[%s208 + $0x18] sm:$0xff] %v550
        %567 = vst [vmem:[%s208 + $0x20] sm:$0xff] %v551
        %568 = vst [vmem:[%s208 + $0x28] sm:$0xff] %v552
        %569 = vst [vmem:[%s208 + $0x30] sm:$0xff] %v553
        %570 = vst [vmem:[%s208 + $0x38] sm:$0xff] %v554
        %571 = vst [vmem:[%s208 + $0x40] sm:$0xff] %v555
        %572 = vst [vmem:[%s208 + $0x48] sm:$0xff] %v556
        %573 = vst [vmem:[%s208 + $0x50] sm:$0xff] %v557
        %574 = vst [vmem:[%s208 + $0x58] sm:$0xff] %v558
        %575 = vst [vmem:[%s208 + $0x60] sm:$0xff] %v559
        %576 = vst [vmem:[%s208 + $0x68] sm:$0xff] %v560
        %577 = vst [vmem:[%s208 + $0x70] sm:$0xff] %v561
        %578 = vst [vmem:[%s208 + $0x78] sm:$0xff] %v562
        %p579 = scmp.eq.s32.totalorder %s22, %s23
        // Predicated region
        $region37: #{tpu_custom_call.1} parent=31 // pred_check
          %p580 = pneg %p579
        $region38: #{tpu_custom_call.1} parent=31 // pred_check_branch
          %582 = sbr.rel (%p580) target = $region40
        $region39: #{tpu_custom_call.1} parent=31 // pred_region
          %v583 = vlaneseq
          %v584 = vshrl.u32 %v583, 7
          %v585 = vadd.s32 %v584, 8
          %v586 = vadd.s32 %v584, 16
          %v587 = vadd.s32 %v584, 24
          %v588 = vadd.s32 %v584, 32
          %v589 = vadd.s32 %v584, 40
          %v590 = vadd.s32 %v584, 48
          %v591 = vadd.s32 %v584, 56
          %v592 = vadd.s32 %v584, 64
          %v593 = vadd.s32 %v584, 72
          %v594 = vadd.s32 %v584, 80
          %v595 = vadd.s32 %v584, 88
          %v596 = vadd.s32 %v584, 96
          %v597 = vadd.s32 %v584, 104
          %v598 = vadd.s32 %v584, 112
          %v599 = vadd.s32 %v584, 120
          %v600 = vlaneseq
          %v601 = vand.u32 %v600, 127
          %vm602 = vcmp.eq.s32.totalorder %v584, %v601
          %vm603 = vcmp.eq.s32.totalorder %v585, %v601
          %vm604 = vcmp.eq.s32.totalorder %v586, %v601
          %vm605 = vcmp.eq.s32.totalorder %v587, %v601
          %vm606 = vcmp.eq.s32.totalorder %v588, %v601
          %vm607 = vcmp.eq.s32.totalorder %v589, %v601
          %vm608 = vcmp.eq.s32.totalorder %v590, %v601
          %vm609 = vcmp.eq.s32.totalorder %v591, %v601
          %vm610 = vcmp.eq.s32.totalorder %v592, %v601
          %vm611 = vcmp.eq.s32.totalorder %v593, %v601
          %vm612 = vcmp.eq.s32.totalorder %v594, %v601
          %vm613 = vcmp.eq.s32.totalorder %v595, %v601
          %vm614 = vcmp.eq.s32.totalorder %v596, %v601
          %vm615 = vcmp.eq.s32.totalorder %v597, %v601
          %vm616 = vcmp.eq.s32.totalorder %v598, %v601
          %vm617 = vcmp.eq.s32.totalorder %v599, %v601
          %v618 = vld [vmem:[%s208] sm:$0xff]
          %v619 = vld [vmem:[%s208 + $0x8] sm:$0xff]
          %v620 = vld [vmem:[%s208 + $0x10] sm:$0xff]
          %v621 = vld [vmem:[%s208 + $0x18] sm:$0xff]
          %v622 = vld [vmem:[%s208 + $0x20] sm:$0xff]
          %v623 = vld [vmem:[%s208 + $0x28] sm:$0xff]
          %v624 = vld [vmem:[%s208 + $0x30] sm:$0xff]
          %v625 = vld [vmem:[%s208 + $0x38] sm:$0xff]
          %v626 = vld [vmem:[%s208 + $0x40] sm:$0xff]
          %v627 = vld [vmem:[%s208 + $0x48] sm:$0xff]
          %v628 = vld [vmem:[%s208 + $0x50] sm:$0xff]
          %v629 = vld [vmem:[%s208 + $0x58] sm:$0xff]
          %v630 = vld [vmem:[%s208 + $0x60] sm:$0xff]
          %v631 = vld [vmem:[%s208 + $0x68] sm:$0xff]
          %v632 = vld [vmem:[%s208 + $0x70] sm:$0xff]
          %v633 = vld [vmem:[%s208 + $0x78] sm:$0xff]
          %v634 = vstv %s223
          %v635 = vadd.f32 %v618, %v634
          %v636 = vadd.f32 %v619, %v634
          %v637 = vadd.f32 %v620, %v634
          %v638 = vadd.f32 %v621, %v634
          %v639 = vadd.f32 %v622, %v634
          %v640 = vadd.f32 %v623, %v634
          %v641 = vadd.f32 %v624, %v634
          %v642 = vadd.f32 %v625, %v634
          %v643 = vadd.f32 %v626, %v634
          %v644 = vadd.f32 %v627, %v634
          %v645 = vadd.f32 %v628, %v634
          %v646 = vadd.f32 %v629, %v634
          %v647 = vadd.f32 %v630, %v634
          %v648 = vadd.f32 %v631, %v634
          %v649 = vadd.f32 %v632, %v634
          %v650 = vadd.f32 %v633, %v634
          %v651 = vsel %vm602, %v635, %v618
          %v652 = vsel %vm603, %v636, %v619
          %v653 = vsel %vm604, %v637, %v620
          %v654 = vsel %vm605, %v638, %v621
          %v655 = vsel %vm606, %v639, %v622
          %v656 = vsel %vm607, %v640, %v623
          %v657 = vsel %vm608, %v641, %v624
          %v658 = vsel %vm609, %v642, %v625
          %v659 = vsel %vm610, %v643, %v626
          %v660 = vsel %vm611, %v644, %v627
          %v661 = vsel %vm612, %v645, %v628
          %v662 = vsel %vm613, %v646, %v629
          %v663 = vsel %vm614, %v647, %v630
          %v664 = vsel %vm615, %v648, %v631
          %v665 = vsel %vm616, %v649, %v632
          %v666 = vsel %vm617, %v650, %v633
          %667 = vst [vmem:[%s208] sm:$0xff] %v651
          %668 = vst [vmem:[%s208 + $0x8] sm:$0xff] %v652
          %669 = vst [vmem:[%s208 + $0x10] sm:$0xff] %v653
          %670 = vst [vmem:[%s208 + $0x18] sm:$0xff] %v654
          %671 = vst [vmem:[%s208 + $0x20] sm:$0xff] %v655
          %672 = vst [vmem:[%s208 + $0x28] sm:$0xff] %v656
          %673 = vst [vmem:[%s208 + $0x30] sm:$0xff] %v657
          %674 = vst [vmem:[%s208 + $0x38] sm:$0xff] %v658
          %675 = vst [vmem:[%s208 + $0x40] sm:$0xff] %v659
          %676 = vst [vmem:[%s208 + $0x48] sm:$0xff] %v660
          %677 = vst [vmem:[%s208 + $0x50] sm:$0xff] %v661
          %678 = vst [vmem:[%s208 + $0x58] sm:$0xff] %v662
          %679 = vst [vmem:[%s208 + $0x60] sm:$0xff] %v663
          %680 = vst [vmem:[%s208 + $0x68] sm:$0xff] %v664
          %681 = vst [vmem:[%s208 + $0x70] sm:$0xff] %v665
          %682 = vst [vmem:[%s208 + $0x78] sm:$0xff] %v666
        $region40: #{tpu_custom_call.1} parent=31 // pred_fallthru
          _
        %s683 = sand.u32 %s113, 1
        %s684 = scalar_lea.sflag [#allocation3], %s683
        %s685 = sand.u32 %s113, 1
        %s686 = smul.addr %s685, 128
        %s687 = scalar_lea.vmem [#allocation5], %s686
        // Predicated region
        $region41: #{tpu_custom_call.1} parent=31 // pred_check
          %p688 = pneg %p123
        $region42: #{tpu_custom_call.1} parent=31 // pred_check_branch
          %690 = sbr.rel (%p688) target = $region44
        $region43: #{tpu_custom_call.1} parent=31 // pred_region
          %s691 = smul.u32 16, %s22
          %s693 = ssub.s32 2048, 2048
          %694 = vsyncadd %s684, %s693
          %s695 = smul.addr %s691, 2
          %s696 = sadd.s32 %s23, %s695
          %s697 = smul.addr %s696, 128
          %s698 = scalar_lea.hbm %s3, %s697
          %s699 = sshll.u32 %s687, 4
          %s700 = int_to_ptr.vmem [resolvable:$true] %s699
          %705 = dma.vmem_to_hbm [thread:$0]  %s700, 2048, %s698, %s684, 128, 256, 8
        $region44: #{tpu_custom_call.1} parent=31 // pred_fallthru
          _
      $region32: #{tpu_custom_call.1} parent=5 // pred_fallthru
        _
      %p706 = scmp.le.s32.totalorder 2, %s13
      // Predicated region
      $region45: #{tpu_custom_call.1} parent=5 // pred_check
        %p707 = pneg %p706
      $region46: #{tpu_custom_call.1} parent=5 // pred_check_branch
        %709 = sbr.rel (%p707) target = $region48
      $region47: #{tpu_custom_call.1} parent=5 // pred_region
        %s710 = ssub.s32 %s13, 2
        // Predicated region
        $region49: #{tpu_custom_call.1} parent=47 // pred_check
          %p711 = pneg %p129
        $region50: #{tpu_custom_call.1} parent=47 // pred_check_branch
          %713 = sbr.rel (%p711) target = $region52
        $region51: #{tpu_custom_call.1} parent=47 // pred_region
          %s714 = sand.u32 %s114, 1
          %s715 = scalar_lea.sflag [#allocation3], %s714
          %s716 = sand.u32 %s114, 1
          %s717 = smul.addr %s716, 128
          %s718 = scalar_lea.vmem [#allocation5], %s717
          %719 = dma.done %s715, 2048
        $region52: #{tpu_custom_call.1} parent=47 // pred_fallthru
          _
      $region48: #{tpu_custom_call.1} parent=5 // pred_fallthru
        _
    $region6: #{tpu_custom_call.1} parent=1 // loop_footer
      %s17 = sadd.s32 1, %s13
    $region7: #{tpu_custom_call.1} parent=1 // loop_footer_branch
      %12 = sbr.rel target = $region3
    $region8: #{tpu_custom_call.1} parent=1 // loop_exit
      _
    %720 = vsyncpa [#allocation3], 1
    %s721 = scalar_lea.sflag [#allocation3], 1
    %722 = vsyncpa %s721, 1
    %723 = vsyncpa [#allocation4], 1
    %s724 = scalar_lea.sflag [#allocation4], 1
    %725 = vsyncpa %s724, 1

</llo_original>
